<compile_context>
chip_gen: v6e
topology: v6e:2x2x1
jax: 0.10.0
libtpu: 0.0.40
codegen_flags: <defaults>
</compile_context>

<pallas_src>
import functools
from typing import NamedTuple

import jax
import jax.numpy as jnp
from jax.experimental import pallas as pl
from jax.experimental.pallas import tpu as pltpu


def _round_up(x, m):
    return ((x + m - 1) // m) * m


class GraphMeta(NamedTuple):
    """Static per-graph tiling plan (hashable -> usable as a jit static arg)."""
    n_dst: int
    n_src: int
    d: int
    dp: int
    tm: int
    tk: int
    fsn_resident: bool
    vmem_limit_bytes: int


# Conservative working-set cap: leaves >= 20 MiB headroom on v7x (64 MiB VMEM / TC)
# and is far under v5e / v6e's 128 MiB physical VMEM.
_VMEM_BUDGET = 44 << 20


def _vmem_footprint(tm, tk, n_src_p, dp, fsn_resident):
    """Upper bound on kernel VMEM bytes (every pipelined operand counted x2)."""
    fsn_rows = n_src_p if fsn_resident else tk
    return (2 * tm * tk * 2            # adjacency tile, bf16 (dominant stream)
            + 2 * fsn_rows * dp * 2    # out-norm'ed source features, bf16
            + 2 * tm * dp * 4          # destination features, f32
            + 2 * 2 * dp * dp * 4      # W1^T + W2^T, f32
            + 2 * dp * 4               # b1 + b2, f32
            + 2 * tm * dp * 4)         # output tile (doubles as f32 accumulator)


def _plan(n_dst, n_src, d, tile_dst, tile_k):
    dp = _round_up(d + 1, 128)   # +1 lane: MXU "ones" column accumulates the in-degree
    # bf16 adjacency packs 16 rows per sublane group -> keep tm a multiple of 16.
    tm = min(_round_up(tile_dst, 16), _round_up(n_dst, 16))
    # v7x megacore: keep >= 2 dst ("parallel") tiles whenever n_dst allows it so both
    # TensorCores get work.  (No effect on single-TC v5e / v6e.)
    if n_dst > 16 and _round_up(n_dst, tm) // tm < 2:
        tm = _round_up((n_dst + 1) // 2, 16)
    tk = min(_round_up(tile_k, 128), _round_up(n_src, 128))

    # Prefer the source-feature slab fully VMEM-resident (DMA'd once -> no per-dst-tile
    # re-reads); otherwise stream it in (tk, dp) blocks and shrink the adjacency tile
    # until the working set fits the budget.
    fsn_resident = _vmem_footprint(tm, tk, _round_up(n_src, tk), dp, True) <= _VMEM_BUDGET
    if not fsn_resident:
        while (_vmem_footprint(tm, tk, _round_up(n_src, tk), dp, False) > _VMEM_BUDGET
               and tk > 512):
            tk = max(512, _round_up(tk // 2, 128))
        while (_vmem_footprint(tm, tk, _round_up(n_src, tk), dp, False) > _VMEM_BUDGET
               and tm > 256):
            tm = max(256, _round_up(tm // 2, 16))

    footprint = _vmem_footprint(tm, tk, _round_up(n_src, tk), dp, fsn_resident)
    # Explicit scoped-VMEM limit: >= footprint + margin, capped safely below v7x's
    # 64 MiB physical VMEM (v5e/v6e have 128 MiB, so this is always legal).
    vmem_limit = int(min(max(footprint + (8 << 20), 32 << 20), 56 << 20))
    return GraphMeta(n_dst, n_src, d, dp, tm, tk, fsn_resident, vmem_limit)


def prepare_graph(adj, embed_dim, *, tile_dst=512, tile_k=2048):
    """Once-per-graph preprocessing (the analogue of graph.out_degrees()).

    Pads + casts the dense 0/1 adjacency to bf16 (exact for unweighted edges) and
    computes source out-degrees.  Hoisted out of the per-layer forward so every NGCF
    layer streams only the 2-byte adjacency instead of re-reading a f32 copy and
    re-writing a bf16 one on each call.
    """
    n_dst, n_src = adj.shape
    meta = _plan(n_dst, n_src, embed_dim, tile_dst, tile_k)
    n_dst_p = _round_up(n_dst, meta.tm)
    n_src_p = _round_up(n_src, meta.tk)
    adj = adj.astype(jnp.float32)
    src_out_deg = jnp.sum(adj, axis=0)            # graph.out_degrees(etype)
    # TODO(synk): weighted edges would lose precision in this bf16 cast; only 0/1
    # adjacencies (the NGCF case) are exact.
    adj_p = jnp.zeros((n_dst_p, n_src_p), jnp.bfloat16)
    adj_p = adj_p.at[:n_dst, :n_src].set(adj.astype(jnp.bfloat16))
    return adj_p, src_out_deg, meta


def _ngcf_kernel(adj_ref, fsn_ref, fdst_ref, w1_ref, w2_ref, b12_ref, out_ref,
                 *, d, tk, fsn_resident):
    # adj_ref  : (tm, tk)            bf16 adjacency tile (dst tile x src tile)
    # fsn_ref  : (tk | n_src_p, dp)  bf16 out-norm'ed src feats; lane `d` holds 1.0
    # fdst_ref : (tm, dp)            f32 dst feats (lanes >= d are zero)
    # w1_ref   : (dp, dp)            f32 W1^T, zero-padded
    # w2_ref   : (dp, dp)            f32 W2^T, zero-padded
    # b12_ref  : (1, dp)             f32 (b1 + b2), zero-padded
    # out_ref  : (tm, dp)            f32; doubles as the k-axis accumulator
    k = pl.program_id(1)

    @pl.when(k == 0)
    def _():
        out_ref[...] = jnp.zeros_like(out_ref)

    if fsn_resident:
        # Whole src-feature slab is resident in VMEM (DMA'd once); pick this k-step's
        # rows with a static-size dynamic slice.
        start = pl.multiple_of(k * tk, 128)
        fsn = fsn_ref[pl.ds(start, tk), :]
    else:
        fsn = fsn_ref[...]

    # Neighbour aggregation AND in-degree (via the ones column) in one MXU matmul,
    # accumulated in f32 directly in the resident output block (no extra scratch).
    out_ref[...] += jnp.dot(adj_ref[...], fsn, preferred_element_type=jnp.float32)

    @pl.when(k == pl.num_programs(1) - 1)
    def _():
        acc = out_ref[...]                      # lanes [:d] = agg, lane d = in-degree
        fd = fdst_ref[...]
        in_deg = acc[:, d:d + 1]                # (tm, 1), exact f32 edge count

        # msg = indeg*(fd@W1^T + b1) + (fd*agg)@W2^T + indeg*b2.
        # Two separate MXU dots (no lane-dim concat temporary); this epilogue runs
        # once per dst tile so f32 weights are kept for accuracy (bf16 optional).
        msg = (jnp.dot(in_deg * fd, w1_ref[...], preferred_element_type=jnp.float32)
               + jnp.dot(fd * acc, w2_ref[...], preferred_element_type=jnp.float32)
               + in_deg * b12_ref[...])

        # dst nodes with no incoming edge keep their original feature (DGL semantics).
        rst = jnp.where(in_deg > 0.0, msg, fd)

        # in-degree norm: clamp(min=1)^-0.5
        rst = rst * jax.lax.rsqrt(jnp.maximum(in_deg, 1.0))

        # LeakyReLU(0.2)
        rst = jnp.where(rst >= 0.0, rst, 0.2 * rst)

        # TODO(synk): dropout implemented as identity (eval mode); training dropout
        # would use pltpu.prng_seed / pltpu.prng_random_bits.

        # F.normalize(p=2, dim=1): padded lanes are zero, so the norm over dp lanes
        # equals the norm over the real d lanes.
        sumsq = jnp.sum(rst * rst, axis=1, keepdims=True)
        rst = rst * jax.lax.rsqrt(jnp.maximum(sumsq, 1e-24))

        out_ref[...] = rst


@functools.partial(jax.jit, static_argnames=("meta",))
def ngcf_layer_forward(adj_p, src_out_deg, feat_src, feat_dst, w1, b1, w2, b2, *, meta):
    n_dst, n_src, d, dp = meta.n_dst, meta.n_src, meta.d, meta.dp
    tm, tk = meta.tm, meta.tk
    n_dst_p, n_src_p = adj_p.shape

    # Out-degree norm folded into the source features once (O(n_src*d), not per tile).
    onorm = jax.lax.rsqrt(jnp.maximum(src_out_deg.astype(jnp.float32), 1.0))
    fs_n = feat_src.astype(jnp.float32) * onorm[:, None]

    fs_p = jnp.zeros((n_src_p, dp), jnp.float32)
    fs_p = fs_p.at[:n_src, :d].set(fs_n)
    fs_p = fs_p.at[:n_src, d].set(1.0)             # ones column -> in-degree via MXU
    fs_p = fs_p.astype(jnp.bfloat16)

    fd_p = jnp.zeros((n_dst_p, dp), jnp.float32)
    fd_p = fd_p.at[:n_dst, :d].set(feat_dst.astype(jnp.float32))

    # Pre-transposed weights: y = x @ W^T  (PyTorch nn.Linear layout in).
    w1t = jnp.zeros((dp, dp), jnp.float32).at[:d, :d].set(w1.T.astype(jnp.float32))
    w2t = jnp.zeros((dp, dp), jnp.float32).at[:d, :d].set(w2.T.astype(jnp.float32))
    b12 = jnp.zeros((1, dp), jnp.float32).at[0, :d].set((b1 + b2).astype(jnp.float32))

    if meta.fsn_resident:
        # Single full-extent block with a constant index_map: DMA'd once, stays
        # resident across the whole grid (no per-dst-tile re-reads).
        fsn_spec = pl.BlockSpec((n_src_p, dp), lambda i, k: (0, 0))
    else:
        fsn_spec = pl.BlockSpec((tk, dp), lambda i, k: (k, 0))

    kernel = functools.partial(_ngcf_kernel, d=d, tk=tk,
                               fsn_resident=meta.fsn_resident)

    # TODO(synk): for very sparse real graphs, a per-(i,k) nonzero-tile bitmap via
    # scalar prefetch + a manual (pl.ANY) double-buffered adj copy could skip empty
    # tiles' DMA + MXU work entirely; fp8 adjacency on v7x is another halving of the
    # dominant stream. Both left out pending profiling.
    out = pl.pallas_call(
        kernel,
        out_shape=jax.ShapeDtypeStruct((n_dst_p, dp), jnp.float32),
        grid_spec=pltpu.PrefetchScalarGridSpec(
            num_scalar_prefetch=0,
            grid=(n_dst_p // tm, n_src_p // tk),
            in_specs=[
                pl.BlockSpec((tm, tk), lambda i, k: (i, k)),    # adj tile (bf16)
                fsn_spec,                                       # normed src feats (bf16)
                pl.BlockSpec((tm, dp), lambda i, k: (i, 0)),    # dst feats (f32)
                pl.BlockSpec((dp, dp), lambda i, k: (0, 0)),    # W1^T
                pl.BlockSpec((dp, dp), lambda i, k: (0, 0)),    # W2^T
                pl.BlockSpec((1, dp), lambda i, k: (0, 0)),     # b1 + b2
            ],
            out_specs=pl.BlockSpec((tm, dp), lambda i, k: (i, 0)),
        ),
        compiler_params=pltpu.CompilerParams(
            dimension_semantics=("parallel", "arbitrary"),
            vmem_limit_bytes=meta.vmem_limit_bytes),
    )(adj_p, fs_p, fd_p, w1t, w2t, b12)

    return out[:n_dst, :d]


def ngcf_layer_reference(adj, feat_src, feat_dst, w1, b1, w2, b2):
    """Pure-JAX f32 reference mirroring the PyTorch/DGL forward (eval mode)."""
    out_deg = jnp.clip(jnp.sum(adj, axis=0), 1.0, None)
    fs_n = feat_src * (out_deg ** -0.5)[:, None]
    agg = adj @ fs_n
    in_deg = jnp.sum(adj, axis=1, keepdims=True)
    msg = (in_deg * (feat_dst @ w1.T + b1[None, :])
           + (feat_dst * agg) @ w2.T + in_deg * b2[None, :])
    rst = jnp.where(in_deg > 0.0, msg, feat_dst)
    rst = rst * (jnp.clip(in_deg, 1.0, None) ** -0.5)
    rst = jnp.where(rst >= 0.0, rst, 0.2 * rst)
    l2 = jnp.sqrt(jnp.sum(rst * rst, axis=1, keepdims=True))
    return rst / jnp.maximum(l2, 1e-12)


if __name__ == "__main__":
    # Small problem: 64 src nodes, 64 dst nodes, embed_size = 32.
    N_SRC, N_DST, D = 64, 64, 32

    key = jax.random.PRNGKey(0)
    k_adj, k_fs, k_fd, k_w1, k_w2 = jax.random.split(key, 5)

    # Dense adjacency (dst x src); some dst rows may have zero in-degree.
    adj = jax.random.bernoulli(k_adj, p=0.15, shape=(N_DST, N_SRC)).astype(jnp.float32)

    feat_src = jax.random.normal(k_fs, (N_SRC, D), dtype=jnp.float32)
    feat_dst = jax.random.normal(k_fd, (N_DST, D), dtype=jnp.float32)

    # nn.Linear(D, D), xavier_uniform_, zero bias (PyTorch weight layout: y = x @ W^T + b).
    bound = (6.0 / (D + D)) ** 0.5
    w1 = jax.random.uniform(k_w1, (D, D), minval=-bound, maxval=bound, dtype=jnp.float32)
    w2 = jax.random.uniform(k_w2, (D, D), minval=-bound, maxval=bound, dtype=jnp.float32)
    b1 = jnp.zeros((D,), dtype=jnp.float32)
    b2 = jnp.zeros((D,), dtype=jnp.float32)

    # Once-per-graph preprocessing (bf16-padded adjacency + out-degrees), reused by
    # every NGCF layer — no per-layer f32->bf16 adjacency cast.
    adj_p, src_out_deg, meta = prepare_graph(adj, D)

    out = ngcf_layer_forward(adj_p, src_out_deg, feat_src, feat_dst, w1, b1, w2, b2,
                             meta=meta)
    out = jax.block_until_ready(out)

    ref = ngcf_layer_reference(adj, feat_src, feat_dst, w1, b1, w2, b2)
    assert out.shape == (N_DST, D)
    assert jnp.allclose(out, ref, rtol=2e-3, atol=2e-3), (
        "mismatch vs JAX reference: max abs diff = "
        f"{float(jnp.max(jnp.abs(out - ref)))}")

    print("KERNEL_OK")
</pallas_src>

<mosaic_0001>
module attributes {stable_mosaic.version = 11 : i64} {
  func.func @_ngcf_kernel(%arg0: i32, %arg1: i32, %arg2: memref<32x128xbf16, #tpu.memory_space<vmem>>, %arg3: memref<128x128xbf16, #tpu.memory_space<vmem>>, %arg4: memref<32x128xf32, #tpu.memory_space<vmem>>, %arg5: memref<128x128xf32, #tpu.memory_space<vmem>>, %arg6: memref<128x128xf32, #tpu.memory_space<vmem>>, %arg7: memref<1x128xf32, #tpu.memory_space<vmem>>, %arg8: memref<32x128xf32, #tpu.memory_space<vmem>>) attributes {dimension_semantics = [#tpu.dimension_semantics<parallel>, #tpu.dimension_semantics<arbitrary>], iteration_bounds = array<i64: 2, 1>, scalar_prefetch = 0 : i64, scratch_operands = 0 : i64, tpu.core_type = #tpu.core_type<tc>, window_params = [{transform_indices = @transform_0, window_bounds = array<i64: 32, 128>}, {pipeline_mode = #tpu.pipeline_mode<synchronous>, transform_indices = @transform_1, window_bounds = array<i64: 128, 128>}, {transform_indices = @transform_2, window_bounds = array<i64: 32, 128>}, {pipeline_mode = #tpu.pipeline_mode<synchronous>, transform_indices = @transform_3, window_bounds = array<i64: 128, 128>}, {pipeline_mode = #tpu.pipeline_mode<synchronous>, transform_indices = @transform_4, window_bounds = array<i64: 128, 128>}, {pipeline_mode = #tpu.pipeline_mode<synchronous>, transform_indices = @transform_5, window_bounds = array<i64: 1, 128>}, {transform_indices = @transform_6, window_bounds = array<i64: 32, 128>}]} {
    %c0_i32 = arith.constant 0 : i32
    %0 = arith.cmpi eq, %arg1, %c0_i32 : i32
    %1 = arith.extui %0 : i1 to i32
    %c0_i32_0 = arith.constant 0 : i32
    %2 = arith.cmpi ne, %1, %c0_i32_0 : i32
    scf.if %2 {
      %cst_9 = arith.constant 0.000000e+00 : f32
      %15 = vector.broadcast %cst_9 : f32 to vector<32x128xf32>
      %c0_10 = arith.constant 0 : index
      %c0_11 = arith.constant 0 : index
      %16 = vector.load %arg8[%c0_10, %c0_11] : memref<32x128xf32, #tpu.memory_space<vmem>>, vector<32x128xf32>
      tpu.vector_store %arg8[%c0_10, %c0_11], %15 {strides = array<i32>} : memref<32x128xf32, #tpu.memory_space<vmem>>, vector<32x128xf32>,
    } else {
    }
    %c128_i32 = arith.constant 128 : i32
    %3 = arith.muli %arg1, %c128_i32 : i32
    %4 = tpu.assume_multiple %3, 128 : i32
    %5 = arith.index_cast %4 : i32 to index
    %c0 = arith.constant 0 : index
    %6 = vector.load %arg3[%5, %c0] : memref<128x128xbf16, #tpu.memory_space<vmem>>, vector<128x128xbf16>
    %c0_1 = arith.constant 0 : index
    %c0_2 = arith.constant 0 : index
    %7 = vector.load %arg8[%c0_1, %c0_2] : memref<32x128xf32, #tpu.memory_space<vmem>>, vector<32x128xf32>
    %c0_3 = arith.constant 0 : index
    %c0_4 = arith.constant 0 : index
    %8 = vector.load %arg2[%c0_3, %c0_4] : memref<32x128xbf16, #tpu.memory_space<vmem>>, vector<32x128xbf16>
    %cst = arith.constant dense<0.000000e+00> : vector<32x128xf32>
    %9 = tpu.matmul %8, %6, %cst {dimension_numbers = #tpu.dot_dimension_numbers<[1], [0], [0], [1], [0, 0, 1, 1], [], []>} : vector<32x128xbf16>, vector<128x128xbf16>, vector<32x128xf32> -> vector<32x128xf32>
    %10 = arith.addf %7, %9 : vector<32x128xf32>
    %c0_5 = arith.constant 0 : index
    %c0_6 = arith.constant 0 : index
    %11 = vector.load %arg8[%c0_5, %c0_6] : memref<32x128xf32, #tpu.memory_space<vmem>>, vector<32x128xf32>
    tpu.vector_store %arg8[%c0_5, %c0_6], %10 {strides = array<i32>} : memref<32x128xf32, #tpu.memory_space<vmem>>, vector<32x128xf32>,
    %c0_i32_7 = arith.constant 0 : i32
    %12 = arith.cmpi eq, %arg1, %c0_i32_7 : i32
    %13 = arith.extui %12 : i1 to i32
    %c0_i32_8 = arith.constant 0 : i32
    %14 = arith.cmpi ne, %13, %c0_i32_8 : i32
    scf.if %14 {
      %c0_9 = arith.constant 0 : index
      %c0_10 = arith.constant 0 : index
      %15 = vector.load %arg8[%c0_9, %c0_10] : memref<32x128xf32, #tpu.memory_space<vmem>>, vector<32x128xf32>
      %c0_11 = arith.constant 0 : index
      %c0_12 = arith.constant 0 : index
      %16 = vector.load %arg4[%c0_11, %c0_12] : memref<32x128xf32, #tpu.memory_space<vmem>>, vector<32x128xf32>
      %17 = vector.extract_strided_slice %15 {offsets = [0, 32], sizes = [32, 1], strides = [1, 1]} : vector<32x128xf32> to vector<32x1xf32>
      %18 = vector.broadcast %17 : vector<32x1xf32> to vector<32x128xf32>
      %19 = arith.mulf %18, %16 : vector<32x128xf32>
      %c0_13 = arith.constant 0 : index
      %c0_14 = arith.constant 0 : index
      %20 = vector.load %arg5[%c0_13, %c0_14] : memref<128x128xf32, #tpu.memory_space<vmem>>, vector<128x128xf32>
      %cst_15 = arith.constant dense<0.000000e+00> : vector<32x128xf32>
      %21 = tpu.matmul %19, %20, %cst_15 {dimension_numbers = #tpu.dot_dimension_numbers<[1], [0], [0], [1], [0, 0, 1, 1], [], []>} : vector<32x128xf32>, vector<128x128xf32>, vector<32x128xf32> -> vector<32x128xf32>
      %22 = arith.mulf %16, %15 : vector<32x128xf32>
      %c0_16 = arith.constant 0 : index
      %c0_17 = arith.constant 0 : index
      %23 = vector.load %arg6[%c0_16, %c0_17] : memref<128x128xf32, #tpu.memory_space<vmem>>, vector<128x128xf32>
      %cst_18 = arith.constant dense<0.000000e+00> : vector<32x128xf32>
      %24 = tpu.matmul %22, %23, %cst_18 {dimension_numbers = #tpu.dot_dimension_numbers<[1], [0], [0], [1], [0, 0, 1, 1], [], []>} : vector<32x128xf32>, vector<128x128xf32>, vector<32x128xf32> -> vector<32x128xf32>
      %25 = arith.addf %21, %24 : vector<32x128xf32>
      %c0_19 = arith.constant 0 : index
      %c0_20 = arith.constant 0 : index
      %26 = vector.load %arg7[%c0_19, %c0_20] : memref<1x128xf32, #tpu.memory_space<vmem>>, vector<1x128xf32>
      %27 = vector.broadcast %17 : vector<32x1xf32> to vector<32x128xf32>
      %28 = vector.broadcast %26 : vector<1x128xf32> to vector<32x128xf32>
      %29 = arith.mulf %27, %28 : vector<32x128xf32>
      %30 = arith.addf %25, %29 : vector<32x128xf32>
      %cst_21 = arith.constant 0.000000e+00 : f32
      %31 = vector.broadcast %cst_21 : f32 to vector<32x1xf32>
      %32 = arith.cmpf ogt, %17, %31 : vector<32x1xf32>
      %33 = vector.shape_cast %32 : vector<32x1xi1> to vector<32x1xi1>
      %34 = vector.broadcast %33 : vector<32x1xi1> to vector<32x128xi1>
      %35 = arith.select %34, %30, %16 : vector<32x128xi1>, vector<32x128xf32>
      %cst_22 = arith.constant 1.000000e+00 : f32
      %36 = vector.broadcast %cst_22 : f32 to vector<32x1xf32>
      %37 = arith.maximumf %17, %36 : vector<32x1xf32>
      %38 = math.rsqrt %37 : vector<32x1xf32>
      %39 = vector.broadcast %38 : vector<32x1xf32> to vector<32x128xf32>
      %40 = arith.mulf %35, %39 : vector<32x128xf32>
      %cst_23 = arith.constant 0.000000e+00 : f32
      %41 = vector.broadcast %cst_23 : f32 to vector<32x128xf32>
      %42 = arith.cmpf oge, %40, %41 : vector<32x128xf32>
      %cst_24 = arith.constant 2.000000e-01 : f32
      %43 = vector.broadcast %cst_24 : f32 to vector<32x128xf32>
      %44 = arith.mulf %43, %40 : vector<32x128xf32>
      %45 = arith.select %42, %40, %44 : vector<32x128xi1>, vector<32x128xf32>
      %46 = arith.mulf %45, %45 : vector<32x128xf32>
      %cst_25 = arith.constant dense<0.000000e+00> : vector<32xf32>
      %47 = vector.multi_reduction <add>, %46, %cst_25 [1] : vector<32x128xf32> to vector<32xf32>
      %48 = vector.shape_cast %47 : vector<32xf32> to vector<32x1xf32>
      %cst_26 = arith.constant 1.000000e-24 : f32
      %49 = vector.broadcast %cst_26 : f32 to vector<32x1xf32>
      %50 = arith.maximumf %48, %49 : vector<32x1xf32>
      %51 = math.rsqrt %50 : vector<32x1xf32>
      %52 = vector.broadcast %51 : vector<32x1xf32> to vector<32x128xf32>
      %53 = arith.mulf %45, %52 : vector<32x128xf32>
      %c0_27 = arith.constant 0 : index
      %c0_28 = arith.constant 0 : index
      %54 = vector.load %arg8[%c0_27, %c0_28] : memref<32x128xf32, #tpu.memory_space<vmem>>, vector<32x128xf32>
      tpu.vector_store %arg8[%c0_27, %c0_28], %53 {strides = array<i32>} : memref<32x128xf32, #tpu.memory_space<vmem>>, vector<32x128xf32>,
    } else {
    }
    return
  }
  func.func @transform_0(%arg0: i32, %arg1: i32) -> (i32, i32) {
    %c0_i32 = arith.constant 0 : i32
    return %arg0, %arg1 : i32, i32
  }
  func.func @transform_1(%arg0: i32, %arg1: i32) -> (i32, i32) {
    %c0_i32 = arith.constant 0 : i32
    %c0_i32_0 = arith.constant 0 : i32
    %c0_i32_1 = arith.constant 0 : i32
    return %c0_i32, %c0_i32_0 : i32, i32
  }
  func.func @transform_2(%arg0: i32, %arg1: i32) -> (i32, i32) {
    %c0_i32 = arith.constant 0 : i32
    %c0_i32_0 = arith.constant 0 : i32
    return %arg0, %c0_i32 : i32, i32
  }
  func.func @transform_3(%arg0: i32, %arg1: i32) -> (i32, i32) {
    %c0_i32 = arith.constant 0 : i32
    %c0_i32_0 = arith.constant 0 : i32
    %c0_i32_1 = arith.constant 0 : i32
    return %c0_i32, %c0_i32_0 : i32, i32
  }
  func.func @transform_4(%arg0: i32, %arg1: i32) -> (i32, i32) {
    %c0_i32 = arith.constant 0 : i32
    %c0_i32_0 = arith.constant 0 : i32
    %c0_i32_1 = arith.constant 0 : i32
    return %c0_i32, %c0_i32_0 : i32, i32
  }
  func.func @transform_5(%arg0: i32, %arg1: i32) -> (i32, i32) {
    %c0_i32 = arith.constant 0 : i32
    %c0_i32_0 = arith.constant 0 : i32
    %c0_i32_1 = arith.constant 0 : i32
    return %c0_i32, %c0_i32_0 : i32, i32
  }
  func.func @transform_6(%arg0: i32, %arg1: i32) -> (i32, i32) {
    %c0_i32 = arith.constant 0 : i32
    %c0_i32_0 = arith.constant 0 : i32
    return %arg0, %c0_i32 : i32, i32
  }
}

</mosaic_0001>

<llo_original>
// kernel: ngcf_layer_forward.1
$region0: #{ngcf_layer_forward.1}
  #allocation0 [shape = 'u32[]', space=smem, size = 0x4, offset = 0x4, fixed_abs, tag = 'smem constant byte address 0x4 - core index']
  #allocation1 [shape = 'u32[144,128]{1,0:T(1,128)}', space=vmem, size = 0x12000, scoped, tag = 'internal scratch']
  %s0 = inlined_call_operand.vmem [shape: bf16[64,128], index: 0, kind: input, shape index: {}]
  %s1 = inlined_call_operand.vmem [shape: bf16[128,128], index: 1, kind: input, shape index: {}]
  %s2 = inlined_call_operand.vmem [shape: f32[64,128], index: 2, kind: input, shape index: {}]
  %s3 = inlined_call_operand.vmem [shape: f32[128,128], index: 3, kind: input, shape index: {}]
  %s4 = inlined_call_operand.vmem [shape: f32[128,128], index: 4, kind: input, shape index: {}]
  %s5 = inlined_call_operand.vmem [shape: f32[1,128], index: 5, kind: input, shape index: {}]
  %s6 = inlined_call_operand.vmem [shape: f32[64,128], index: 6, kind: output, shape index: {}]
  %s7 = sld [smem:[#allocation0]]
  $region65: #{ngcf_layer_forward.1} parent=0
    _
  %s9 = ssub.s32 1, %s7
  %s10 = scalar_select 0, %s9, %s7
  loop: start=0, step=1, limit=4
  $region2: #{ngcf_layer_forward.1} parent=0 // loop_pre_header
    _
  $region3: #{ngcf_layer_forward.1} parent=0 // loop_header
    %s12 = sphi 0, %s16
    %p13 = scmp.ge.s32.totalorder %s12, 4
    %s19 = sphi 0, %s31
    %s20 = sphi 0, %s27
    %s21 = sphi 0, %s19
    %s22 = sphi 0, %s20
    %s23 = sphi 0, %s21
    %s24 = sphi 0, %s22
    %s36 = sphi 0, %s38
    %s39 = sphi 0, %s36
    %s40 = sphi 0, %s39
    %s56 = sphi 0, %s40
    %s60 = sphi 0, %s60
    %s62 = sphi 0, %s60
    %s63 = sphi 0, %s62
    %s77 = sphi 0, %s63
    %s83 = sphi 0, %s85
    %s86 = sphi 0, %s83
    %s87 = sphi 0, %s86
    %s103 = sphi 0, %s87
    %s107 = sphi 0, %s107
    %s109 = sphi 0, %s107
    %s110 = sphi 0, %s109
    %s124 = sphi 0, %s110
    %s128 = sphi 0, %s128
    %s130 = sphi 0, %s128
    %s131 = sphi 0, %s130
    %s145 = sphi 0, %s131
    %s149 = sphi 0, %s149
    %s151 = sphi 0, %s149
    %s152 = sphi 0, %s151
    %s166 = sphi 0, %s152
    %s172 = sphi 0, %s174
    %s175 = sphi 0, %s172
    %s176 = sphi 0, %s175
    %s192 = sphi 0, %s176
  $region4: #{ngcf_layer_forward.1} parent=0 // loop_header_branch
    %15 = sbr.rel (%p13) target = $region8
  $region5: #{ngcf_layer_forward.1} parent=0 // loop_body
    %s17 = ssub.s32 %s12, 1
    %s18 = ssub.s32 %s12, 2
    %s25 = sadd.s32 1, %s20
    %p26 = scmp.ge.s32.totalorder %s25, 1
    %s27 = scalar_select %p26, 0, %s25
    %s28 = sadd.s32 1, %s19
    %s29 = scalar_select %p26, %s28, %s19
    %p30 = scmp.ge.s32.totalorder %s29, 2
    %s31 = scalar_select %p30, 0, %s29
    %s32 = ssub.s32 %s19, %s31
    %s33 = ssub.s32 %s20, %s27
    %s34 = sor.u32 %s32, %s33
    %p35 = scmp.eq.s32.totalorder %s34, 0
    %s37 = sadd.s32 %s36, 1
    %s38 = scalar_select %p35, %s36, %s37
    %p41 = pneg %p35
    %p42 = scmp.eq.s32.totalorder %s12, 1
    %p43 = por %p41, %p42
    %p44 = scmp.ne.s32.totalorder %s36, %s39
    %p45 = scmp.eq.s32.totalorder %s12, 0
    %p46 = por %p44, %p45
    %p47 = scmp.ne.s32.totalorder %s36, %s39
    %p48 = scmp.eq.s32.totalorder %s17, 1
    %p49 = por %p47, %p48
    %p50 = scmp.ne.s32.totalorder %s39, %s40
    %p51 = scmp.eq.s32.totalorder %s17, 0
    %p52 = por %p50, %p51
    %p53 = scmp.ne.s32.totalorder %s39, %s40
    %p54 = scmp.eq.s32.totalorder %s18, 1
    %p55 = por %p53, %p54
    %p57 = scmp.ne.s32.totalorder %s40, %s56
    %p58 = scmp.eq.s32.totalorder %s18, 0
    %p59 = por %p57, %p58
    %s61 = sadd.s32 %s60, 1
    %p64 = scmp.eq.s32.totalorder %s12, 1
    %p65 = scmp.ne.s32.totalorder %s60, %s62
    %p66 = scmp.eq.s32.totalorder %s12, 0
    %p67 = por %p65, %p66
    %p68 = scmp.ne.s32.totalorder %s60, %s62
    %p69 = scmp.eq.s32.totalorder %s17, 1
    %p70 = por %p68, %p69
    %p71 = scmp.ne.s32.totalorder %s62, %s63
    %p72 = scmp.eq.s32.totalorder %s17, 0
    %p73 = por %p71, %p72
    %p74 = scmp.ne.s32.totalorder %s62, %s63
    %p75 = scmp.eq.s32.totalorder %s18, 1
    %p76 = por %p74, %p75
    %p78 = scmp.ne.s32.totalorder %s63, %s77
    %p79 = scmp.eq.s32.totalorder %s18, 0
    %p80 = por %p78, %p79
    %s81 = ssub.s32 %s19, %s31
    %p82 = scmp.eq.s32.totalorder %s81, 0
    %s84 = sadd.s32 %s83, 1
    %s85 = scalar_select %p82, %s83, %s84
    %p88 = pneg %p82
    %p89 = scmp.eq.s32.totalorder %s12, 1
    %p90 = por %p88, %p89
    %p91 = scmp.ne.s32.totalorder %s83, %s86
    %p92 = scmp.eq.s32.totalorder %s12, 0
    %p93 = por %p91, %p92
    %p94 = scmp.ne.s32.totalorder %s83, %s86
    %p95 = scmp.eq.s32.totalorder %s17, 1
    %p96 = por %p94, %p95
    %p97 = scmp.ne.s32.totalorder %s86, %s87
    %p98 = scmp.eq.s32.totalorder %s17, 0
    %p99 = por %p97, %p98
    %p100 = scmp.ne.s32.totalorder %s86, %s87
    %p101 = scmp.eq.s32.totalorder %s18, 1
    %p102 = por %p100, %p101
    %p104 = scmp.ne.s32.totalorder %s87, %s103
    %p105 = scmp.eq.s32.totalorder %s18, 0
    %p106 = por %p104, %p105
    %s108 = sadd.s32 %s107, 1
    %p111 = scmp.eq.s32.totalorder %s12, 1
    %p112 = scmp.ne.s32.totalorder %s107, %s109
    %p113 = scmp.eq.s32.totalorder %s12, 0
    %p114 = por %p112, %p113
    %p115 = scmp.ne.s32.totalorder %s107, %s109
    %p116 = scmp.eq.s32.totalorder %s17, 1
    %p117 = por %p115, %p116
    %p118 = scmp.ne.s32.totalorder %s109, %s110
    %p119 = scmp.eq.s32.totalorder %s17, 0
    %p120 = por %p118, %p119
    %p121 = scmp.ne.s32.totalorder %s109, %s110
    %p122 = scmp.eq.s32.totalorder %s18, 1
    %p123 = por %p121, %p122
    %p125 = scmp.ne.s32.totalorder %s110, %s124
    %p126 = scmp.eq.s32.totalorder %s18, 0
    %p127 = por %p125, %p126
    %s129 = sadd.s32 %s128, 1
    %p132 = scmp.eq.s32.totalorder %s12, 1
    %p133 = scmp.ne.s32.totalorder %s128, %s130
    %p134 = scmp.eq.s32.totalorder %s12, 0
    %p135 = por %p133, %p134
    %p136 = scmp.ne.s32.totalorder %s128, %s130
    %p137 = scmp.eq.s32.totalorder %s17, 1
    %p138 = por %p136, %p137
    %p139 = scmp.ne.s32.totalorder %s130, %s131
    %p140 = scmp.eq.s32.totalorder %s17, 0
    %p141 = por %p139, %p140
    %p142 = scmp.ne.s32.totalorder %s130, %s131
    %p143 = scmp.eq.s32.totalorder %s18, 1
    %p144 = por %p142, %p143
    %p146 = scmp.ne.s32.totalorder %s131, %s145
    %p147 = scmp.eq.s32.totalorder %s18, 0
    %p148 = por %p146, %p147
    %s150 = sadd.s32 %s149, 1
    %p153 = scmp.eq.s32.totalorder %s12, 1
    %p154 = scmp.ne.s32.totalorder %s149, %s151
    %p155 = scmp.eq.s32.totalorder %s12, 0
    %p156 = por %p154, %p155
    %p157 = scmp.ne.s32.totalorder %s149, %s151
    %p158 = scmp.eq.s32.totalorder %s17, 1
    %p159 = por %p157, %p158
    %p160 = scmp.ne.s32.totalorder %s151, %s152
    %p161 = scmp.eq.s32.totalorder %s17, 0
    %p162 = por %p160, %p161
    %p163 = scmp.ne.s32.totalorder %s151, %s152
    %p164 = scmp.eq.s32.totalorder %s18, 1
    %p165 = por %p163, %p164
    %p167 = scmp.ne.s32.totalorder %s152, %s166
    %p168 = scmp.eq.s32.totalorder %s18, 0
    %p169 = por %p167, %p168
    %s170 = ssub.s32 %s19, %s31
    %p171 = scmp.eq.s32.totalorder %s170, 0
    %s173 = sadd.s32 %s172, 1
    %s174 = scalar_select %p171, %s172, %s173
    %p177 = pneg %p171
    %p178 = scmp.eq.s32.totalorder %s12, 1
    %p179 = por %p177, %p178
    %p180 = scmp.ne.s32.totalorder %s172, %s175
    %p181 = scmp.eq.s32.totalorder %s12, 0
    %p182 = por %p180, %p181
    %p183 = scmp.ne.s32.totalorder %s172, %s175
    %p184 = scmp.eq.s32.totalorder %s17, 1
    %p185 = por %p183, %p184
    %p186 = scmp.ne.s32.totalorder %s175, %s176
    %p187 = scmp.eq.s32.totalorder %s17, 0
    %p188 = por %p186, %p187
    %p189 = scmp.ne.s32.totalorder %s175, %s176
    %p190 = scmp.eq.s32.totalorder %s18, 1
    %p191 = por %p189, %p190
    %p193 = scmp.ne.s32.totalorder %s176, %s192
    %p194 = scmp.eq.s32.totalorder %s18, 0
    %p195 = por %p193, %p194
    %p196 = scmp.le.s32.totalorder 1, %s12
    %p197 = scmp.lt.s32.totalorder %s12, 3
    %p198 = pnand %p196, %p197
    %p199 = pneg %p198
    // Predicated region
    $region9: #{ngcf_layer_forward.1} parent=5 // pred_check
      _
    $region10: #{ngcf_layer_forward.1} parent=5 // pred_check_branch
      %201 = sbr.rel (%p198) target = $region12
    $region11: #{ngcf_layer_forward.1} parent=5 // pred_region
      %s202 = ssub.s32 %s12, 1
      // Predicated region
      $region13: #{ngcf_layer_forward.1} parent=11 // pred_check
        %p203 = pneg %p73
      $region14: #{ngcf_layer_forward.1} parent=11 // pred_check_branch
        %205 = sbr.rel (%p203) target = $region16
      $region15: #{ngcf_layer_forward.1} parent=11 // pred_region
        _
      $region16: #{ngcf_layer_forward.1} parent=11 // pred_fallthru
        _
      // Predicated region
      $region17: #{ngcf_layer_forward.1} parent=11 // pred_check
        %p206 = pneg %p120
      $region18: #{ngcf_layer_forward.1} parent=11 // pred_check_branch
        %208 = sbr.rel (%p206) target = $region20
      $region19: #{ngcf_layer_forward.1} parent=11 // pred_region
        _
      $region20: #{ngcf_layer_forward.1} parent=11 // pred_fallthru
        _
      // Predicated region
      $region21: #{ngcf_layer_forward.1} parent=11 // pred_check
        %p209 = pneg %p141
      $region22: #{ngcf_layer_forward.1} parent=11 // pred_check_branch
        %211 = sbr.rel (%p209) target = $region24
      $region23: #{ngcf_layer_forward.1} parent=11 // pred_region
        _
      $region24: #{ngcf_layer_forward.1} parent=11 // pred_fallthru
        _
      // Predicated region
      $region25: #{ngcf_layer_forward.1} parent=11 // pred_check
        %p212 = pneg %p162
      $region26: #{ngcf_layer_forward.1} parent=11 // pred_check_branch
        %214 = sbr.rel (%p212) target = $region28
      $region27: #{ngcf_layer_forward.1} parent=11 // pred_region
        _
      $region28: #{ngcf_layer_forward.1} parent=11 // pred_fallthru
        _
    $region12: #{ngcf_layer_forward.1} parent=5 // pred_fallthru
      _
    %p215 = scmp.lt.s32.totalorder %s12, 2
    // Predicated region
    $region29: #{ngcf_layer_forward.1} parent=5 // pred_check
      %p216 = pneg %p215
    $region30: #{ngcf_layer_forward.1} parent=5 // pred_check_branch
      %218 = sbr.rel (%p216) target = $region32
    $region31: #{ngcf_layer_forward.1} parent=5 // pred_region
      // Predicated region
      $region33: #{ngcf_layer_forward.1} parent=31 // pred_check
        %p219 = pneg %p46
      $region34: #{ngcf_layer_forward.1} parent=31 // pred_check_branch
        %221 = sbr.rel (%p219) target = $region36
      $region35: #{ngcf_layer_forward.1} parent=31 // pred_region
        %s222 = smul.u32 4, %s19
        %p223 = scmp.lt.s32.totalorder %s222, 7
        %s224 = scalar_select %p223, %s222, 7
        %p225 = scmp.lt.s32.totalorder %s20, 0
        %s226 = scalar_select %p225, %s20, 0
        %s227 = sadd.s32 %s226, %s224
        %s228 = smul.addr %s227, 4
        %s229 = scalar_lea.vmem %s0, %s228
        %s230 = smul.u32 4, %s19
      $region36: #{ngcf_layer_forward.1} parent=31 // pred_fallthru
        _
      // Predicated region
      $region37: #{ngcf_layer_forward.1} parent=31 // pred_check
        %p231 = pneg %p93
      $region38: #{ngcf_layer_forward.1} parent=31 // pred_check_branch
        %233 = sbr.rel (%p231) target = $region40
      $region39: #{ngcf_layer_forward.1} parent=31 // pred_region
        %s234 = smul.u32 4, %s19
        %p235 = scmp.lt.s32.totalorder %s234, 7
        %s236 = scalar_select %p235, %s234, 7
        %s237 = smul.addr %s236, 8
        %s238 = scalar_lea.vmem %s2, %s237
        %s239 = smul.u32 4, %s19
      $region40: #{ngcf_layer_forward.1} parent=31 // pred_fallthru
        _
    $region32: #{ngcf_layer_forward.1} parent=5 // pred_fallthru
      _
    %p240 = scmp.le.s32.totalorder 1, %s12
    %p241 = scmp.lt.s32.totalorder %s12, 3
    %p242 = pnand %p240, %p241
    %p243 = pneg %p242
    // Predicated region
    $region41: #{ngcf_layer_forward.1} parent=5 // pred_check
      _
    $region42: #{ngcf_layer_forward.1} parent=5 // pred_check_branch
      %245 = sbr.rel (%p242) target = $region44
    $region43: #{ngcf_layer_forward.1} parent=5 // pred_region
      %s246 = ssub.s32 %s12, 1
      %s247 = smul.u32 4, %s21
      %p248 = scmp.lt.s32.totalorder %s247, 7
      %s249 = scalar_select %p248, %s247, 7
      %p250 = scmp.lt.s32.totalorder %s22, 0
      %s251 = scalar_select %p250, %s22, 0
      %s252 = sadd.s32 %s251, %s249
      %s253 = smul.addr %s252, 4
      %s254 = scalar_lea.vmem %s0, %s253
      %p255 = pneg %p52
      %p256 = pneg %p49
      %p257 = pneg %p73
      %p258 = pneg %p70
      %s259 = smul.u32 4, %s21
      %p260 = scmp.lt.s32.totalorder %s259, 7
      %s261 = scalar_select %p260, %s259, 7
      %s262 = smul.addr %s261, 8
      %s263 = scalar_lea.vmem %s2, %s262
      %p264 = pneg %p99
      %p265 = pneg %p96
      %p266 = pneg %p120
      %p267 = pneg %p117
      %p268 = pneg %p141
      %p269 = pneg %p138
      %p270 = pneg %p162
      %p271 = pneg %p159
      %p272 = pneg %p188
      %p273 = pneg %p185
      %s274 = smul.u32 4, %s21
      %p275 = scmp.lt.s32.totalorder %s274, 7
      %s276 = scalar_select %p275, %s274, 7
      %s277 = smul.addr %s276, 8
      %s278 = scalar_lea.vmem %s6, %s277
      %s279 = smul.u32 4, %s21
      %p280 = scmp.lt.s32.totalorder %s279, 7
      %s281 = scalar_select %p280, %s279, 7
      %p282 = scmp.lt.s32.totalorder %s22, 0
      %s283 = scalar_select %p282, %s22, 0
      %s284 = sadd.s32 %s283, %s281
      %s285 = smul.addr %s284, 4
      %s286 = scalar_lea.vmem %s0, %s285
      %s287 = smul.u32 4, %s21
      %s288 = smul.u32 4, %s21
      %p289 = scmp.lt.s32.totalorder %s288, 7
      %s290 = scalar_select %p289, %s288, 7
      %s291 = smul.addr %s290, 8
      %s292 = scalar_lea.vmem %s2, %s291
      %s293 = smul.u32 4, %s21
      %s294 = smul.u32 4, %s21
      %p295 = scmp.lt.s32.totalorder %s294, 7
      %s296 = scalar_select %p295, %s294, 7
      %s297 = smul.addr %s296, 8
      %s298 = scalar_lea.vmem %s6, %s297
      %s299 = smul.u32 4, %s21
      %p301 = scmp.eq.s32.totalorder %s22, 0
      // Predicated region
      $region45: #{ngcf_layer_forward.1} parent=43 // pred_check
        %p302 = pneg %p301
      $region46: #{ngcf_layer_forward.1} parent=43 // pred_check_branch
        %304 = sbr.rel (%p302) target = $region48
      $region47: #{ngcf_layer_forward.1} parent=43 // pred_region
        %305 = vst [vmem:[%s298] sm:$0xff] 0.0
        %306 = vst [vmem:[%s298 + $0x8] sm:$0xff] 0.0
        %307 = vst [vmem:[%s298 + $0x10] sm:$0xff] 0.0
        %308 = vst [vmem:[%s298 + $0x18] sm:$0xff] 0.0
      $region48: #{ngcf_layer_forward.1} parent=43 // pred_fallthru
        _
      %s309 = smul.u32 %s22, 128
      %s310 = sshra.s32 %s309, 3
      %s311 = sand.u32 %s309, 7
      %s312 = smul.addr %s310, 4
      %s313 = scalar_lea.vmem %s1, %s312
      %v314 = vld [vmem:[%s313] sm:$0xf]
      %v315 = vld [vmem:[%s313 + $0x4] sm:$0xf]
      %v316 = vld [vmem:[%s313 + $0x8] sm:$0xf]
      %v317 = vld [vmem:[%s313 + $0xc] sm:$0xf]
      %v318 = vld [vmem:[%s313 + $0x10] sm:$0xf]
      %v319 = vld [vmem:[%s313 + $0x14] sm:$0xf]
      %v320 = vld [vmem:[%s313 + $0x18] sm:$0xf]
      %v321 = vld [vmem:[%s313 + $0x1c] sm:$0xf]
      %v322 = vld [vmem:[%s313 + $0x20] sm:$0xf]
      %v323 = vld [vmem:[%s313 + $0x24] sm:$0xf]
      %v324 = vld [vmem:[%s313 + $0x28] sm:$0xf]
      %v325 = vld [vmem:[%s313 + $0x2c] sm:$0xf]
      %v326 = vld [vmem:[%s313 + $0x30] sm:$0xf]
      %v327 = vld [vmem:[%s313 + $0x34] sm:$0xf]
      %v328 = vld [vmem:[%s313 + $0x38] sm:$0xf]
      %v329 = vld [vmem:[%s313 + $0x3c] sm:$0xf]
      %v330 = vld [vmem:[%s298] sm:$0xff]
      %v331 = vld [vmem:[%s298 + $0x8] sm:$0xff]
      %v332 = vld [vmem:[%s298 + $0x10] sm:$0xff]
      %v333 = vld [vmem:[%s298 + $0x18] sm:$0xff]
      %v334 = vld [vmem:[%s286] sm:$0xf]
      %v335 = vld [vmem:[%s286 + $0x4] sm:$0xf]
      %v336 = vld [vmem:[%s286 + $0x8] sm:$0xf]
      %v337 = vld [vmem:[%s286 + $0xc] sm:$0xf]
      %v342 = vunpack.c.l.b16 %v334
      %v343 = vunpack.c.l.b16 %v335
      %v344 = vunpack.c.l.b16 %v336
      %v345 = vunpack.c.l.b16 %v337
      %v346 = vpack.c.b16 %v343, %v342
      %v347 = vpack.c.b16 %v345, %v344
      %v366 = vunpack.c.l.b16 %v314
      %v367 = vunpack.c.l.b16 %v315
      %v368 = vunpack.c.l.b16 %v316
      %v369 = vunpack.c.l.b16 %v317
      %v370 = vunpack.c.l.b16 %v318
      %v371 = vunpack.c.l.b16 %v319
      %v372 = vunpack.c.l.b16 %v320
      %v373 = vunpack.c.l.b16 %v321
      %v374 = vunpack.c.l.b16 %v322
      %v375 = vunpack.c.l.b16 %v323
      %v376 = vunpack.c.l.b16 %v324
      %v377 = vunpack.c.l.b16 %v325
      %v378 = vunpack.c.l.b16 %v326
      %v379 = vunpack.c.l.b16 %v327
      %v380 = vunpack.c.l.b16 %v328
      %v381 = vunpack.c.l.b16 %v329
      %v382 = vpack.c.b16 %v367, %v366
      %v383 = vpack.c.b16 %v369, %v368
      %v384 = vpack.c.b16 %v371, %v370
      %v385 = vpack.c.b16 %v373, %v372
      %v386 = vpack.c.b16 %v375, %v374
      %v387 = vpack.c.b16 %v377, %v376
      %v388 = vpack.c.b16 %v379, %v378
      %v389 = vpack.c.b16 %v381, %v380
      %398 = vmatprep.subr.bf16.mxu0 0
      %399 = vmatpush1.bf16.msra.mxu0 %v389
      %400 = vmatprep.subr.bf16.mxu0 0
      %401 = vmatpush1.bf16.msra.mxu0 %v388
      %402 = vmatprep.subr.bf16.mxu0 0
      %403 = vmatpush1.bf16.msra.mxu0 %v387
      %404 = vmatprep.subr.bf16.mxu0 0
      %405 = vmatpush1.bf16.msra.mxu0 %v386
      %406 = vmatprep.subr.bf16.mxu0 0
      %407 = vmatpush1.bf16.msra.mxu0 %v385
      %408 = vmatprep.subr.bf16.mxu0 0
      %409 = vmatpush1.bf16.msra.mxu0 %v384
      %410 = vmatprep.subr.bf16.mxu0 0
      %411 = vmatpush1.bf16.msra.mxu0 %v383
      %412 = vmatprep.subr.bf16.mxu0 0
      %413 = vmatpush1.bf16.msra.mxu0 %v382
      %414 = vmatprep.subr.bf16.mxu0 0
      %415 = vmatpush2.bf16.msra.mxu0 0
      %416 = vmatprep.subr.bf16.mxu0 0
      %417 = vmatpush2.bf16.msra.mxu0 0
      %418 = vmatprep.subr.bf16.mxu0 0
      %419 = vmatpush2.bf16.msra.mxu0 0
      %420 = vmatprep.subr.bf16.mxu0 0
      %421 = vmatpush2.bf16.msra.mxu0 0
      %422 = vmatprep.subr.bf16.mxu0 0
      %423 = vmatpush2.bf16.msra.mxu0 0
      %424 = vmatprep.subr.bf16.mxu0 0
      %425 = vmatpush2.bf16.msra.mxu0 0
      %426 = vmatprep.subr.bf16.mxu0 0
      %427 = vmatpush2.bf16.msra.mxu0 0
      %428 = vmatprep.subr.bf16.mxu0 0
      %429 = vmatpush2.bf16.msra.mxu0 0
      %430 = vmatprep.mubr.bf16.mxu0 0
      %431 = vmatmul.mubr.bf16.gmra.mxu0 %v346
      %v432 = vpop.f32.mrf.mxu0
      %v433 = vadd.f32 0.0, %v432
      %v434 = vpop.f32.mrf.mxu0
      %v435 = vpop.f32.mrf.mxu0
      %v436 = vadd.f32 0.0, %v435
      %v437 = vpop.f32.mrf.mxu0
      %438 = vmatprep.mubr.bf16.mxu0 0
      %439 = vmatmul.mubr.bf16.gmra.mxu0 %v347
      %v440 = vpop.f32.mrf.mxu0
      %v441 = vadd.f32 0.0, %v440
      %v442 = vpop.f32.mrf.mxu0
      %v443 = vpop.f32.mrf.mxu0
      %v444 = vadd.f32 0.0, %v443
      %v445 = vpop.f32.mrf.mxu0
      %446 = vdwg.mxu0
      %v447 = vadd.f32 %v330, %v433
      %v448 = vadd.f32 %v331, %v436
      %v449 = vadd.f32 %v332, %v441
      %v450 = vadd.f32 %v333, %v444
      %451 = vst [vmem:[%s298] sm:$0xff] %v447
      %452 = vst [vmem:[%s298 + $0x8] sm:$0xff] %v448
      %453 = vst [vmem:[%s298 + $0x10] sm:$0xff] %v449
      %454 = vst [vmem:[%s298 + $0x18] sm:$0xff] %v450
      // Predicated region
      $region49: #{ngcf_layer_forward.1} parent=43 // pred_check
        %p455 = pneg %p301
      $region50: #{ngcf_layer_forward.1} parent=43 // pred_check_branch
        %457 = sbr.rel (%p455) target = $region52
      $region51: #{ngcf_layer_forward.1} parent=43 // pred_region
        %v458 = vld [vmem:[%s298] sm:$0xff]
        %v459 = vld [vmem:[%s298 + $0x8] sm:$0xff]
        %v460 = vld [vmem:[%s298 + $0x10] sm:$0xff]
        %v461 = vld [vmem:[%s298 + $0x18] sm:$0xff]
        %v462 = vld [vmem:[%s292] sm:$0xff]
        %v463 = vld [vmem:[%s292 + $0x8] sm:$0xff]
        %v464 = vld [vmem:[%s292 + $0x10] sm:$0xff]
        %v465 = vld [vmem:[%s292 + $0x18] sm:$0xff]
        %467 = vset.pattern.permute.xlu0 32
        %468 = vperm.xlu0 %467, %v458
        %v469 = vpop.permute.xlu0 %468
        %472 = vset.pattern.permute.xlu0 32
        %473 = vperm.xlu0 %472, %v459
        %v474 = vpop.permute.xlu0 %473
        %477 = vset.pattern.permute.xlu0 32
        %478 = vperm.xlu0 %477, %v460
        %v479 = vpop.permute.xlu0 %478
        %482 = vset.pattern.permute.xlu0 32
        %483 = vperm.xlu0 %482, %v461
        %v484 = vpop.permute.xlu0 %483
        %v486 = vmul.f32 %v469, %v462
        %v487 = vmul.f32 %v474, %v463
        %v488 = vmul.f32 %v479, %v464
        %v489 = vmul.f32 %v484, %v465
        %v490 = vld [vmem:[%s3] sm:$0xff]
        %v491 = vld [vmem:[%s3 + $0x8] sm:$0xff]
        %v492 = vld [vmem:[%s3 + $0x10] sm:$0xff]
        %v493 = vld [vmem:[%s3 + $0x18] sm:$0xff]
        %v494 = vld [vmem:[%s3 + $0x20] sm:$0xff]
        %v495 = vld [vmem:[%s3 + $0x28] sm:$0xff]
        %v496 = vld [vmem:[%s3 + $0x30] sm:$0xff]
        %v497 = vld [vmem:[%s3 + $0x38] sm:$0xff]
        %v498 = vld [vmem:[%s3 + $0x40] sm:$0xff]
        %v499 = vld [vmem:[%s3 + $0x48] sm:$0xff]
        %v500 = vld [vmem:[%s3 + $0x50] sm:$0xff]
        %v501 = vld [vmem:[%s3 + $0x58] sm:$0xff]
        %v502 = vld [vmem:[%s3 + $0x60] sm:$0xff]
        %v503 = vld [vmem:[%s3 + $0x68] sm:$0xff]
        %v504 = vld [vmem:[%s3 + $0x70] sm:$0xff]
        %v505 = vld [vmem:[%s3 + $0x78] sm:$0xff]
        %v506 = vmul.f32 %v462, %v458
        %v507 = vmul.f32 %v463, %v459
        %v508 = vmul.f32 %v464, %v460
        %v509 = vmul.f32 %v465, %v461
        %v510 = vld [vmem:[%s4] sm:$0xff]
        %v511 = vld [vmem:[%s4 + $0x8] sm:$0xff]
        %v512 = vld [vmem:[%s4 + $0x10] sm:$0xff]
        %v513 = vld [vmem:[%s4 + $0x18] sm:$0xff]
        %v514 = vld [vmem:[%s4 + $0x20] sm:$0xff]
        %v515 = vld [vmem:[%s4 + $0x28] sm:$0xff]
        %v516 = vld [vmem:[%s4 + $0x30] sm:$0xff]
        %v517 = vld [vmem:[%s4 + $0x38] sm:$0xff]
        %v518 = vld [vmem:[%s4 + $0x40] sm:$0xff]
        %v519 = vld [vmem:[%s4 + $0x48] sm:$0xff]
        %v520 = vld [vmem:[%s4 + $0x50] sm:$0xff]
        %v521 = vld [vmem:[%s4 + $0x58] sm:$0xff]
        %v522 = vld [vmem:[%s4 + $0x60] sm:$0xff]
        %v523 = vld [vmem:[%s4 + $0x68] sm:$0xff]
        %v524 = vld [vmem:[%s4 + $0x70] sm:$0xff]
        %v525 = vld [vmem:[%s4 + $0x78] sm:$0xff]
        %526 = vmatprep.subr.mxu0 0.0
        %527 = vmatpush1.msra.mxu0 %v525
        %528 = vmatprep.subr.mxu0 0.0
        %529 = vmatpush1.msra.mxu0 %v524
        %530 = vmatprep.subr.mxu0 0.0
        %531 = vmatpush1.msra.mxu0 %v523
        %532 = vmatprep.subr.mxu0 0.0
        %533 = vmatpush1.msra.mxu0 %v522
        %534 = vmatprep.subr.mxu0 0.0
        %535 = vmatpush1.msra.mxu0 %v521
        %536 = vmatprep.subr.mxu0 0.0
        %537 = vmatpush1.msra.mxu0 %v520
        %538 = vmatprep.subr.mxu0 0.0
        %539 = vmatpush1.msra.mxu0 %v519
        %540 = vmatprep.subr.mxu0 0.0
        %541 = vmatpush1.msra.mxu0 %v518
        %542 = vmatprep.subr.mxu0 0.0
        %543 = vmatpush1.msra.mxu0 %v517
        %544 = vmatprep.subr.mxu0 0.0
        %545 = vmatpush1.msra.mxu0 %v516
        %546 = vmatprep.subr.mxu0 0.0
        %547 = vmatpush1.msra.mxu0 %v515
        %548 = vmatprep.subr.mxu0 0.0
        %549 = vmatpush1.msra.mxu0 %v514
        %550 = vmatprep.subr.mxu0 0.0
        %551 = vmatpush1.msra.mxu0 %v513
        %552 = vmatprep.subr.mxu0 0.0
        %553 = vmatpush1.msra.mxu0 %v512
        %554 = vmatprep.subr.mxu0 0.0
        %555 = vmatpush1.msra.mxu0 %v511
        %556 = vmatprep.subr.mxu0 0.0
        %557 = vmatpush1.msra.mxu0 %v510
        %558 = vmatprep.subr.mxu0 0.0
        %559 = vmatpush2.msra.mxu0 0.0
        %560 = vmatprep.subr.mxu0 0.0
        %561 = vmatpush2.msra.mxu0 0.0
        %562 = vmatprep.subr.mxu0 0.0
        %563 = vmatpush2.msra.mxu0 0.0
        %564 = vmatprep.subr.mxu0 0.0
        %565 = vmatpush2.msra.mxu0 0.0
        %566 = vmatprep.subr.mxu0 0.0
        %567 = vmatpush2.msra.mxu0 0.0
        %568 = vmatprep.subr.mxu0 0.0
        %569 = vmatpush2.msra.mxu0 0.0
        %570 = vmatprep.subr.mxu0 0.0
        %571 = vmatpush2.msra.mxu0 0.0
        %572 = vmatprep.subr.mxu0 0.0
        %573 = vmatpush2.msra.mxu0 0.0
        %574 = vmatprep.subr.mxu0 0.0
        %575 = vmatpush2.msra.mxu0 0.0
        %576 = vmatprep.subr.mxu0 0.0
        %577 = vmatpush2.msra.mxu0 0.0
        %578 = vmatprep.subr.mxu0 0.0
        %579 = vmatpush2.msra.mxu0 0.0
        %580 = vmatprep.subr.mxu0 0.0
        %581 = vmatpush2.msra.mxu0 0.0
        %582 = vmatprep.subr.mxu0 0.0
        %583 = vmatpush2.msra.mxu0 0.0
        %584 = vmatprep.subr.mxu0 0.0
        %585 = vmatpush2.msra.mxu0 0.0
        %586 = vmatprep.subr.mxu0 0.0
        %587 = vmatpush2.msra.mxu0 0.0
        %588 = vmatprep.subr.mxu0 0.0
        %589 = vmatpush2.msra.mxu0 0.0
        %590 = vmatprep.mubr.f32.mxu0 0.0
        %591 = vmatmul.mubr.f32.gmra.mxu0 %v506
        %v592 = vpop.f32.mrf.mxu0
        %v593 = vadd.f32 0.0, %v592
        %v594 = vpop.f32.mrf.mxu0
        %595 = vmatprep.mubr.f32.mxu0 0.0
        %596 = vmatmul.mubr.f32.gmra.mxu0 %v507
        %v597 = vpop.f32.mrf.mxu0
        %v598 = vadd.f32 0.0, %v597
        %v599 = vpop.f32.mrf.mxu0
        %600 = vmatprep.mubr.f32.mxu0 0.0
        %601 = vmatmul.mubr.f32.gmra.mxu0 %v508
        %v602 = vpop.f32.mrf.mxu0
        %v603 = vadd.f32 0.0, %v602
        %v604 = vpop.f32.mrf.mxu0
        %605 = vmatprep.mubr.f32.mxu0 0.0
        %606 = vmatmul.mubr.f32.gmra.mxu0 %v509
        %v607 = vpop.f32.mrf.mxu0
        %v608 = vadd.f32 0.0, %v607
        %v609 = vpop.f32.mrf.mxu0
        %610 = vdwg.mxu0
        %611 = vmatprep.subr.mxu0 0.0
        %612 = vmatpush1.msra.mxu0 %v505
        %613 = vmatprep.subr.mxu0 0.0
        %614 = vmatpush1.msra.mxu0 %v504
        %615 = vmatprep.subr.mxu0 0.0
        %616 = vmatpush1.msra.mxu0 %v503
        %617 = vmatprep.subr.mxu0 0.0
        %618 = vmatpush1.msra.mxu0 %v502
        %619 = vmatprep.subr.mxu0 0.0
        %620 = vmatpush1.msra.mxu0 %v501
        %621 = vmatprep.subr.mxu0 0.0
        %622 = vmatpush1.msra.mxu0 %v500
        %623 = vmatprep.subr.mxu0 0.0
        %624 = vmatpush1.msra.mxu0 %v499
        %625 = vmatprep.subr.mxu0 0.0
        %626 = vmatpush1.msra.mxu0 %v498
        %627 = vmatprep.subr.mxu0 0.0
        %628 = vmatpush1.msra.mxu0 %v497
        %629 = vmatprep.subr.mxu0 0.0
        %630 = vmatpush1.msra.mxu0 %v496
        %631 = vmatprep.subr.mxu0 0.0
        %632 = vmatpush1.msra.mxu0 %v495
        %633 = vmatprep.subr.mxu0 0.0
        %634 = vmatpush1.msra.mxu0 %v494
        %635 = vmatprep.subr.mxu0 0.0
        %636 = vmatpush1.msra.mxu0 %v493
        %637 = vmatprep.subr.mxu0 0.0
        %638 = vmatpush1.msra.mxu0 %v492
        %639 = vmatprep.subr.mxu0 0.0
        %640 = vmatpush1.msra.mxu0 %v491
        %641 = vmatprep.subr.mxu0 0.0
        %642 = vmatpush1.msra.mxu0 %v490
        %643 = vmatprep.subr.mxu0 0.0
        %644 = vmatpush2.msra.mxu0 0.0
        %645 = vmatprep.subr.mxu0 0.0
        %646 = vmatpush2.msra.mxu0 0.0
        %647 = vmatprep.subr.mxu0 0.0
        %648 = vmatpush2.msra.mxu0 0.0
        %649 = vmatprep.subr.mxu0 0.0
        %650 = vmatpush2.msra.mxu0 0.0
        %651 = vmatprep.subr.mxu0 0.0
        %652 = vmatpush2.msra.mxu0 0.0
        %653 = vmatprep.subr.mxu0 0.0
        %654 = vmatpush2.msra.mxu0 0.0
        %655 = vmatprep.subr.mxu0 0.0
        %656 = vmatpush2.msra.mxu0 0.0
        %657 = vmatprep.subr.mxu0 0.0
        %658 = vmatpush2.msra.mxu0 0.0
        %659 = vmatprep.subr.mxu0 0.0
        %660 = vmatpush2.msra.mxu0 0.0
        %661 = vmatprep.subr.mxu0 0.0
        %662 = vmatpush2.msra.mxu0 0.0
        %663 = vmatprep.subr.mxu0 0.0
        %664 = vmatpush2.msra.mxu0 0.0
        %665 = vmatprep.subr.mxu0 0.0
        %666 = vmatpush2.msra.mxu0 0.0
        %667 = vmatprep.subr.mxu0 0.0
        %668 = vmatpush2.msra.mxu0 0.0
        %669 = vmatprep.subr.mxu0 0.0
        %670 = vmatpush2.msra.mxu0 0.0
        %671 = vmatprep.subr.mxu0 0.0
        %672 = vmatpush2.msra.mxu0 0.0
        %673 = vmatprep.subr.mxu0 0.0
        %674 = vmatpush2.msra.mxu0 0.0
        %675 = vmatprep.mubr.f32.mxu0 0.0
        %676 = vmatmul.mubr.f32.gmra.mxu0 %v486
        %v677 = vpop.f32.mrf.mxu0
        %v678 = vadd.f32 %v593, %v677
        %v679 = vpop.f32.mrf.mxu0
        %680 = vmatprep.mubr.f32.mxu0 0.0
        %681 = vmatmul.mubr.f32.gmra.mxu0 %v487
        %v682 = vpop.f32.mrf.mxu0
        %v683 = vadd.f32 %v598, %v682
        %v684 = vpop.f32.mrf.mxu0
        %685 = vmatprep.mubr.f32.mxu0 0.0
        %686 = vmatmul.mubr.f32.gmra.mxu0 %v488
        %v687 = vpop.f32.mrf.mxu0
        %v688 = vadd.f32 %v603, %v687
        %v689 = vpop.f32.mrf.mxu0
        %690 = vmatprep.mubr.f32.mxu0 0.0
        %691 = vmatmul.mubr.f32.gmra.mxu0 %v489
        %v692 = vpop.f32.mrf.mxu0
        %v693 = vadd.f32 %v608, %v692
        %v694 = vpop.f32.mrf.mxu0
        %695 = vdwg.mxu0
        %v696 = vld [vmem:[%s5] sm:$0x1]
        %v698 = vlaneseq
        %v699 = vshrl.u32 %v698, 7
        %v700 = vsub.s32 0, %v699
        %v701 = vrot.slane %v696, %v700
        %v703 = vmul.f32 %v469, %v701
        %v704 = vmul.f32 %v474, %v701
        %v705 = vmul.f32 %v479, %v701
        %v706 = vmul.f32 %v484, %v701
        %v707 = vadd.f32 %v678, %v703
        %v708 = vadd.f32 %v683, %v704
        %v709 = vadd.f32 %v688, %v705
        %v710 = vadd.f32 %v693, %v706
        %vm711 = vcmp.gt.f32.partialorder %v458, 0.0
        %vm712 = vcmp.gt.f32.partialorder %v459, 0.0
        %vm713 = vcmp.gt.f32.partialorder %v460, 0.0
        %vm714 = vcmp.gt.f32.partialorder %v461, 0.0
        %v715 = vsel %vm711, 1, 0
        %v716 = vsel %vm712, 1, 0
        %v717 = vsel %vm713, 1, 0
        %v718 = vsel %vm714, 1, 0
        %719 = vset.pattern.permute.xlu0 32
        %720 = vperm.xlu0 %719, %v715
        %v721 = vpop.permute.xlu0 %720
        %722 = vset.pattern.permute.xlu0 32
        %723 = vperm.xlu0 %722, %v716
        %v724 = vpop.permute.xlu0 %723
        %725 = vset.pattern.permute.xlu0 32
        %726 = vperm.xlu0 %725, %v717
        %v727 = vpop.permute.xlu0 %726
        %728 = vset.pattern.permute.xlu0 32
        %729 = vperm.xlu0 %728, %v718
        %v730 = vpop.permute.xlu0 %729
        %vm731 = vcmp.eq.s32.totalorder %v721, 1
        %vm732 = vcmp.eq.s32.totalorder %v724, 1
        %vm733 = vcmp.eq.s32.totalorder %v727, 1
        %vm734 = vcmp.eq.s32.totalorder %v730, 1
        %v735 = vsel %vm731, %v707, %v462
        %v736 = vsel %vm732, %v708, %v463
        %v737 = vsel %vm733, %v709, %v464
        %v738 = vsel %vm734, %v710, %v465
        %v739 = vmax.f32 %v458, 1.0
        %v740 = vmax.f32 %v459, 1.0
        %v741 = vmax.f32 %v460, 1.0
        %v742 = vmax.f32 %v461, 1.0
        %v743 = vrsqrt.pop %v739
        %v744 = vrsqrt.pop %v740
        %v745 = vrsqrt.pop %v741
        %v746 = vrsqrt.pop %v742
        %748 = vset.pattern.permute.xlu0 32
        %749 = vperm.xlu0 %748, %v743
        %v750 = vpop.permute.xlu0 %749
        %753 = vset.pattern.permute.xlu0 32
        %754 = vperm.xlu0 %753, %v744
        %v755 = vpop.permute.xlu0 %754
        %758 = vset.pattern.permute.xlu0 32
        %759 = vperm.xlu0 %758, %v745
        %v760 = vpop.permute.xlu0 %759
        %763 = vset.pattern.permute.xlu0 32
        %764 = vperm.xlu0 %763, %v746
        %v765 = vpop.permute.xlu0 %764
        %v767 = vmul.f32 %v735, %v750
        %v768 = vmul.f32 %v736, %v755
        %v769 = vmul.f32 %v737, %v760
        %v770 = vmul.f32 %v738, %v765
        %vm771 = vcmp.ge.f32.partialorder %v767, 0.0
        %vm772 = vcmp.ge.f32.partialorder %v768, 0.0
        %vm773 = vcmp.ge.f32.partialorder %v769, 0.0
        %vm774 = vcmp.ge.f32.partialorder %v770, 0.0
        %v775 = vmul.f32 %v767, 0.2
        %v776 = vmul.f32 %v768, 0.2
        %v777 = vmul.f32 %v769, 0.2
        %v778 = vmul.f32 %v770, 0.2
        %v779 = vsel %vm771, %v767, %v775
        %v780 = vsel %vm772, %v768, %v776
        %v781 = vsel %vm773, %v769, %v777
        %v782 = vsel %vm774, %v770, %v778
        %v783 = vmul.f32 %v779, %v779
        %v784 = vmul.f32 %v780, %v780
        %v785 = vmul.f32 %v781, %v781
        %v786 = vmul.f32 %v782, %v782
        %787 = vadd.xlane.f32.xlu0 %v783
        %v788 = vpop.xlane.xlu0 %787
        %789 = vadd.xlane.f32.xlu0 %v784
        %v790 = vpop.xlane.xlu0 %789
        %791 = vadd.xlane.f32.xlu0 %v785
        %v792 = vpop.xlane.xlu0 %791
        %793 = vadd.xlane.f32.xlu0 %v786
        %v794 = vpop.xlane.xlu0 %793
        %v795 = vmax.f32 %v788, 1e-24
        %v796 = vmax.f32 %v790, 1e-24
        %v797 = vmax.f32 %v792, 1e-24
        %v798 = vmax.f32 %v794, 1e-24
        %v799 = vrsqrt.pop %v795
        %v800 = vrsqrt.pop %v796
        %v801 = vrsqrt.pop %v797
        %v802 = vrsqrt.pop %v798
        %v803 = vmul.f32 %v779, %v799
        %v804 = vmul.f32 %v780, %v800
        %v805 = vmul.f32 %v781, %v801
        %v806 = vmul.f32 %v782, %v802
        %807 = vst [vmem:[%s298] sm:$0xff] %v803
        %808 = vst [vmem:[%s298 + $0x8] sm:$0xff] %v804
        %809 = vst [vmem:[%s298 + $0x10] sm:$0xff] %v805
        %810 = vst [vmem:[%s298 + $0x18] sm:$0xff] %v806
      $region52: #{ngcf_layer_forward.1} parent=43 // pred_fallthru
        _
      %s811 = smul.u32 4, %s21
      %p812 = scmp.lt.s32.totalorder %s811, 7
      %s813 = scalar_select %p812, %s811, 7
      %s814 = smul.addr %s813, 8
      %s815 = scalar_lea.vmem %s6, %s814
      // Predicated region
      $region53: #{ngcf_layer_forward.1} parent=43 // pred_check
        %p816 = pneg %p185
      $region54: #{ngcf_layer_forward.1} parent=43 // pred_check_branch
        %818 = sbr.rel (%p816) target = $region56
      $region55: #{ngcf_layer_forward.1} parent=43 // pred_region
        %s819 = smul.u32 4, %s21
      $region56: #{ngcf_layer_forward.1} parent=43 // pred_fallthru
        _
    $region44: #{ngcf_layer_forward.1} parent=5 // pred_fallthru
      _
    %p820 = scmp.le.s32.totalorder 2, %s12
    // Predicated region
    $region57: #{ngcf_layer_forward.1} parent=5 // pred_check
      %p821 = pneg %p820
    $region58: #{ngcf_layer_forward.1} parent=5 // pred_check_branch
      %823 = sbr.rel (%p821) target = $region60
    $region59: #{ngcf_layer_forward.1} parent=5 // pred_region
      %s824 = ssub.s32 %s12, 2
      // Predicated region
      $region61: #{ngcf_layer_forward.1} parent=59 // pred_check
        %p825 = pneg %p191
      $region62: #{ngcf_layer_forward.1} parent=59 // pred_check_branch
        %827 = sbr.rel (%p825) target = $region64
      $region63: #{ngcf_layer_forward.1} parent=59 // pred_region
        %s828 = smul.u32 4, %s23
        %p829 = scmp.lt.s32.totalorder %s828, 7
        %s830 = scalar_select %p829, %s828, 7
        %s831 = smul.addr %s830, 8
        %s832 = scalar_lea.vmem %s6, %s831
      $region64: #{ngcf_layer_forward.1} parent=59 // pred_fallthru
        _
    $region60: #{ngcf_layer_forward.1} parent=5 // pred_fallthru
      _
  $region6: #{ngcf_layer_forward.1} parent=0 // loop_footer
    %s16 = sadd.s32 1, %s12
  $region7: #{ngcf_layer_forward.1} parent=0 // loop_footer_branch
    %11 = sbr.rel target = $region3
  $region8: #{ngcf_layer_forward.1} parent=0 // loop_exit
    _

</llo_original>
